<compile_context>
chip_gen: v7x
topology: tpu7x:2x2x1
jax: 0.10.0
libtpu: 0.0.40
codegen_flags: <defaults>
</compile_context>

<pallas_src>
import jax
import jax.numpy as jnp
import numpy as np
from jax.experimental import pallas as pl
from jax.experimental.pallas import tpu as pltpu


def _liconv_matmul_kernel(x_ref, w_ref, b_ref, o_ref):
    """x_ref: VMEM (BT, K_pad); w_ref: VMEM (K_pad, M_pad); b_ref: SMEM (1,);
    o_ref: VMEM (BT, M_pad).  One MXU matmul + bias add per grid step."""
    acc = jnp.dot(x_ref[...], w_ref[...], preferred_element_type=jnp.float32)
    o_ref[...] = (acc + b_ref[0]).astype(o_ref.dtype)


def _round_up(v, m):
    return -(-v // m) * m


def liconv_forward(x, weight, bias):
    """LIConv forward, mode='in'. x: (B, C, KH, KW), weight: (C, H, W), bias: (1,)."""
    B, C, KH, KW = x.shape
    Cw, H, W = weight.shape
    assert Cw == C
    HO, WO = H - KH + 1, W - KW + 1
    K = C * KH * KW          # contraction dim (taps)
    M = HO * WO              # flattened output spatial

    # --- batch-invariant im2col of the learnable weight (wrapper-side, once) ---
    # W_rhs[(c*KH + p)*KW + q, i*WO + j] = weight[c, i+p, j+q]
    w_p = jnp.stack(
        [weight[:, p:p + HO, q:q + WO] for p in range(KH) for q in range(KW)],
        axis=1)                                   # (C, KH*KW, HO, WO)
    w_rhs = w_p.reshape(K, M)                     # (K, M)

    # --- MXU / lane alignment padding (zeros in K contribute 0; M/B padding sliced off) ---
    K_pad = _round_up(K, 128)
    M_pad = _round_up(M, 128)
    B_sub = _round_up(B, 8)                       # sublane-align batch rows
    BT = min(B_sub, 128)                          # batch tile per grid step
    B_pad = _round_up(B_sub, BT)
    grid = (B_pad // BT,)

    x_flat = x.reshape(B, K)
    x_pad = jnp.pad(x_flat, ((0, B_pad - B), (0, K_pad - K)))
    w_pad = jnp.pad(w_rhs, ((0, K_pad - K), (0, M_pad - M)))

    out_flat = pl.pallas_call(
        _liconv_matmul_kernel,
        out_shape=jax.ShapeDtypeStruct((B_pad, M_pad), x.dtype),
        grid=grid,
        in_specs=[
            # batch tile of the flattened inputs (matmul LHS)
            pl.BlockSpec((BT, K_pad), lambda b: (b, 0)),
            # full patch matrix resident in VMEM, shared across all grid steps
            pl.BlockSpec((K_pad, M_pad), lambda b: (0, 0)),
            # scalar bias in SMEM
            pl.BlockSpec((1,), lambda b: (0,),
                         memory_space=pltpu.MemorySpace.SMEM),
        ],
        out_specs=pl.BlockSpec((BT, M_pad), lambda b: (b, 0)),
        compiler_params=pltpu.CompilerParams(
            dimension_semantics=("parallel",)),   # batch axis: megacore-shardable
    )(x_pad, w_pad, bias)

    # slice off padding, restore (B, 1, HO, WO) NCHW layout
    return out_flat[:B, :M].reshape(B, HO, WO)[:, None, :, :]


def liconv_reference(x, weight, bias):
    """Pure-JAX reference matching torch.func.vmap(conv2d(weight, x_b, bias))."""
    outs = []
    for b in range(x.shape[0]):
        o = jax.lax.conv_general_dilated(
            weight[None],        # (1, C, H, W)   NCHW input
            x[b:b + 1],          # (1, C, KH, KW) OIHW filter (O=1, I=C)
            window_strides=(1, 1), padding="VALID",
            dimension_numbers=("NCHW", "OIHW", "NCHW"))
        outs.append(o[0] + bias[0])       # (1, HO, WO)
    return jnp.stack(outs)                # (B, 1, HO, WO)


if __name__ == "__main__":
    B, C = 2, 4
    H, W = 16, 16        # mat_size (learnable matrix)
    KH, KW = 4, 4        # spatial size of the input (used as the conv kernel)

    key = jax.random.PRNGKey(0)
    kx, kw_ = jax.random.split(key)

    # LIConv.__init__ (mode='in'): weight (1, C, H, W) ~ kaiming_normal_, bias zeros(1).
    fan_in = C * H * W
    std = (2.0 / fan_in) ** 0.5
    weight = (jax.random.normal(kw_, (1, C, H, W), dtype=jnp.float32) * std)[0]  # (C, H, W)
    bias = jnp.zeros((1,), dtype=jnp.float32)

    x = jax.random.normal(kx, (B, C, KH, KW), dtype=jnp.float32)

    out = jax.block_until_ready(liconv_forward(x, weight, bias))
    ref = liconv_reference(x, weight, bias)

    assert out.shape == (B, 1, H - KH + 1, W - KW + 1)
    np.testing.assert_allclose(np.asarray(out), np.asarray(ref), rtol=1e-5, atol=1e-5)
    print("KERNEL_OK")
</pallas_src>

<mosaic_0001>
module attributes {stable_mosaic.version = 11 : i64} {
  func.func @_liconv_matmul_kernel(%arg0: i32, %arg1: memref<8x128xf32, #tpu.memory_space<vmem>>, %arg2: memref<128x256xf32, #tpu.memory_space<vmem>>, %arg3: memref<1xf32, #tpu.memory_space<smem>>, %arg4: memref<8x256xf32, #tpu.memory_space<vmem>>) attributes {dimension_semantics = [#tpu.dimension_semantics<parallel>], iteration_bounds = array<i64: 1>, scalar_prefetch = 0 : i64, scratch_operands = 0 : i64, tpu.core_type = #tpu.core_type<tc>, window_params = [{transform_indices = @transform_0, window_bounds = array<i64: 8, 128>}, {pipeline_mode = #tpu.pipeline_mode<synchronous>, transform_indices = @transform_1, window_bounds = array<i64: 128, 256>}, {transform_indices = @transform_2, window_bounds = array<i64: 1>}, {transform_indices = @transform_3, window_bounds = array<i64: 8, 256>}]} {
    %c0 = arith.constant 0 : index
    %c0_0 = arith.constant 0 : index
    %0 = vector.load %arg1[%c0, %c0_0] : memref<8x128xf32, #tpu.memory_space<vmem>>, vector<8x128xf32>
    %c0_1 = arith.constant 0 : index
    %c0_2 = arith.constant 0 : index
    %1 = vector.load %arg2[%c0_1, %c0_2] : memref<128x256xf32, #tpu.memory_space<vmem>>, vector<128x256xf32>
    %cst = arith.constant dense<0.000000e+00> : vector<8x256xf32>
    %2 = tpu.matmul %0, %1, %cst {dimension_numbers = #tpu.dot_dimension_numbers<[1], [0], [0], [1], [0, 0, 1, 1], [], []>} : vector<8x128xf32>, vector<128x256xf32>, vector<8x256xf32> -> vector<8x256xf32>
    %c0_3 = arith.constant 0 : index
    %3 = memref.load %arg3[%c0_3] : memref<1xf32, #tpu.memory_space<smem>>
    %4 = vector.broadcast %3 : f32 to vector<8x256xf32>
    %5 = arith.addf %2, %4 : vector<8x256xf32>
    %c0_4 = arith.constant 0 : index
    %c0_5 = arith.constant 0 : index
    %6 = vector.load %arg4[%c0_4, %c0_5] : memref<8x256xf32, #tpu.memory_space<vmem>>, vector<8x256xf32>
    tpu.vector_store %arg4[%c0_4, %c0_5], %5 {strides = array<i32>} : memref<8x256xf32, #tpu.memory_space<vmem>>, vector<8x256xf32>,
    return
  }
  func.func @transform_0(%arg0: i32) -> (i32, i32) {
    %c0_i32 = arith.constant 0 : i32
    %c0_i32_0 = arith.constant 0 : i32
    return %arg0, %c0_i32 : i32, i32
  }
  func.func @transform_1(%arg0: i32) -> (i32, i32) {
    %c0_i32 = arith.constant 0 : i32
    %c0_i32_0 = arith.constant 0 : i32
    %c0_i32_1 = arith.constant 0 : i32
    return %c0_i32, %c0_i32_0 : i32, i32
  }
  func.func @transform_2(%arg0: i32) -> i32 {
    %c0_i32 = arith.constant 0 : i32
    %c0_i32_0 = arith.constant 0 : i32
    return %c0_i32 : i32
  }
  func.func @transform_3(%arg0: i32) -> (i32, i32) {
    %c0_i32 = arith.constant 0 : i32
    %c0_i32_0 = arith.constant 0 : i32
    return %arg0, %c0_i32 : i32, i32
  }
}

</mosaic_0001>

<llo_original>
// kernel: tpu_custom_call.1
$region0: #{tpu_custom_call.1}
  #allocation0 [shape = 'u32[]', space=smem, size = 0x4, offset = 0x4, fixed_abs, tag = 'smem constant byte address 0x4 - core index']
  #allocation1 [shape = 'u32[144,128]{1,0:T(1,128)}', space=vmem, size = 0x12000, scoped, tag = 'internal scratch']
  #allocation2 [shape = 'f32[1]{0:T(128)S(6)}', space=smem, size = 0x200, scoped, tag = 'scoped memory for tpu_custom_call.1']
  %s0 = inlined_call_operand.hbm [shape: f32[8,128], index: 0, kind: input, shape index: {}]
  %s1 = inlined_call_operand.hbm [shape: f32[128,256], index: 1, kind: input, shape index: {}]
  %s2 = inlined_call_operand.<no memory space> [shape: f32[1], index: 2, kind: input, shape index: {}]
  %s3 = inlined_call_operand.hbm [shape: f32[8,256], index: 3, kind: output, shape index: {}]
  %s4 = sld [smem:[#allocation0]]
  $region30: #{tpu_custom_call.1} parent=0
    _
  %s6 = ssub.s32 1, %s4
  %s7 = scalar_select 0, %s6, %s4
  %8 = sst [smem:[#allocation2]] %s2
  $region1: #{tpu_custom_call.1} parent=0
    #allocation3 [shape = 'u8[4096]{0}', space=vmem, size = 0x1000, scoped, tag = 'input window, operand 0, single buffered']
    #allocation4 [shape = 's32[1]{0}', space=sflag, size = 0x4, scoped, tag = 'scoped memory for tpu_custom_call.1']
    #allocation5 [shape = 's32[1]{0}', space=sflag, size = 0x4, scoped, tag = 'scoped memory for tpu_custom_call.1']
    #allocation6 [shape = 'u8[131072]{0}', space=vmem, size = 0x20000, scoped, tag = 'input window, operand 1, single buffered']
    #allocation7 [shape = 's32[1]{0}', space=sflag, size = 0x4, scoped, tag = 'scoped memory for tpu_custom_call.1']
    #allocation8 [shape = 'u8[8192]{0}', space=vmem, size = 0x2000, scoped, tag = 'output window, operand 0, single buffered']
    %9 = vsyncpa [#allocation4], 0
    %10 = vsyncpa [#allocation7], 0
    %11 = vsyncpa [#allocation5], 0
    // Predicated region
    $region2: #{tpu_custom_call.1} parent=1 // pred_check
      _
    $region3: #{tpu_custom_call.1} parent=1 // pred_check_branch
      %13 = sbr.rel (0) target = $region5
    $region4: #{tpu_custom_call.1} parent=1 // pred_region
      %s15 = ssub.s32 128, 128
      %16 = vsyncadd [#allocation4], %s15
      %s18 = sshll.u32 [#allocation3], 4
      %s19 = int_to_ptr.vmem [resolvable:$true] %s18
      %21 = dma.hbm_to_vmem [thread:$0]  %s0, 128, %s19, [#allocation4]
    $region5: #{tpu_custom_call.1} parent=1 // pred_fallthru
      _
    // Predicated region
    $region6: #{tpu_custom_call.1} parent=1 // pred_check
      _
    $region7: #{tpu_custom_call.1} parent=1 // pred_check_branch
      %23 = sbr.rel (0) target = $region9
    $region8: #{tpu_custom_call.1} parent=1 // pred_region
      %s25 = ssub.s32 4096, 4096
      %26 = vsyncadd [#allocation7], %s25
      %s27 = sshll.u32 [#allocation6], 4
      %s28 = int_to_ptr.vmem [resolvable:$true] %s27
      %33 = dma.hbm_to_vmem [thread:$0]  %s1, 4096, %s28, [#allocation7], 256, 256, 16
    $region9: #{tpu_custom_call.1} parent=1 // pred_fallthru
      _
    // Predicated region
    $region10: #{tpu_custom_call.1} parent=1 // pred_check
      _
    $region11: #{tpu_custom_call.1} parent=1 // pred_check_branch
      %35 = sbr.rel (0) target = $region13
    $region12: #{tpu_custom_call.1} parent=1 // pred_region
      _
    $region13: #{tpu_custom_call.1} parent=1 // pred_fallthru
      _
    // Predicated region
    $region14: #{tpu_custom_call.1} parent=1 // pred_check
      _
    $region15: #{tpu_custom_call.1} parent=1 // pred_check_branch
      %37 = sbr.rel (0) target = $region17
    $region16: #{tpu_custom_call.1} parent=1 // pred_region
      %38 = dma.done [#allocation4], 128
    $region17: #{tpu_custom_call.1} parent=1 // pred_fallthru
      _
    // Predicated region
    $region18: #{tpu_custom_call.1} parent=1 // pred_check
      _
    $region19: #{tpu_custom_call.1} parent=1 // pred_check_branch
      %40 = sbr.rel (0) target = $region21
    $region20: #{tpu_custom_call.1} parent=1 // pred_region
      %41 = dma.done [#allocation7], 4096
    $region21: #{tpu_custom_call.1} parent=1 // pred_fallthru
      _
    %v42 = vld [vmem:[#allocation3] sm:$0xff]
    %v43 = vld [vmem:[#allocation6] sm:$0xff]
    %v44 = vld [vmem:[#allocation6 + $0x8] sm:$0xff]
    %v45 = vld [vmem:[#allocation6 + $0x10] sm:$0xff]
    %v46 = vld [vmem:[#allocation6 + $0x18] sm:$0xff]
    %v47 = vld [vmem:[#allocation6 + $0x20] sm:$0xff]
    %v48 = vld [vmem:[#allocation6 + $0x28] sm:$0xff]
    %v49 = vld [vmem:[#allocation6 + $0x30] sm:$0xff]
    %v50 = vld [vmem:[#allocation6 + $0x38] sm:$0xff]
    %v51 = vld [vmem:[#allocation6 + $0x40] sm:$0xff]
    %v52 = vld [vmem:[#allocation6 + $0x48] sm:$0xff]
    %v53 = vld [vmem:[#allocation6 + $0x50] sm:$0xff]
    %v54 = vld [vmem:[#allocation6 + $0x58] sm:$0xff]
    %v55 = vld [vmem:[#allocation6 + $0x60] sm:$0xff]
    %v56 = vld [vmem:[#allocation6 + $0x68] sm:$0xff]
    %v57 = vld [vmem:[#allocation6 + $0x70] sm:$0xff]
    %v58 = vld [vmem:[#allocation6 + $0x78] sm:$0xff]
    %v59 = vld [vmem:[#allocation6 + $0x80] sm:$0xff]
    %v60 = vld [vmem:[#allocation6 + $0x88] sm:$0xff]
    %v61 = vld [vmem:[#allocation6 + $0x90] sm:$0xff]
    %v62 = vld [vmem:[#allocation6 + $0x98] sm:$0xff]
    %v63 = vld [vmem:[#allocation6 + $0xa0] sm:$0xff]
    %v64 = vld [vmem:[#allocation6 + $0xa8] sm:$0xff]
    %v65 = vld [vmem:[#allocation6 + $0xb0] sm:$0xff]
    %v66 = vld [vmem:[#allocation6 + $0xb8] sm:$0xff]
    %v67 = vld [vmem:[#allocation6 + $0xc0] sm:$0xff]
    %v68 = vld [vmem:[#allocation6 + $0xc8] sm:$0xff]
    %v69 = vld [vmem:[#allocation6 + $0xd0] sm:$0xff]
    %v70 = vld [vmem:[#allocation6 + $0xd8] sm:$0xff]
    %v71 = vld [vmem:[#allocation6 + $0xe0] sm:$0xff]
    %v72 = vld [vmem:[#allocation6 + $0xe8] sm:$0xff]
    %v73 = vld [vmem:[#allocation6 + $0xf0] sm:$0xff]
    %v74 = vld [vmem:[#allocation6 + $0xf8] sm:$0xff]
    %s75 = sld [smem:[#allocation2]]
    %v76 = vstv %s75
    %77 = vmatprep.subr.mxu0 %v44
    %78 = vmatpush1.msra.mxu0 %v43
    %79 = vmatprep.subr.mxu0 %v46
    %80 = vmatpush1.msra.mxu0 %v45
    %81 = vmatprep.subr.mxu0 %v48
    %82 = vmatpush1.msra.mxu0 %v47
    %83 = vmatprep.subr.mxu0 %v50
    %84 = vmatpush1.msra.mxu0 %v49
    %85 = vmatprep.subr.mxu0 %v52
    %86 = vmatpush1.msra.mxu0 %v51
    %87 = vmatprep.subr.mxu0 %v54
    %88 = vmatpush1.msra.mxu0 %v53
    %89 = vmatprep.subr.mxu0 %v56
    %90 = vmatpush1.msra.mxu0 %v55
    %91 = vmatprep.subr.mxu0 %v58
    %92 = vmatpush1.msra.mxu0 %v57
    %93 = vmatprep.subr.mxu0 %v60
    %94 = vmatpush1.msra.mxu0 %v59
    %95 = vmatprep.subr.mxu0 %v62
    %96 = vmatpush1.msra.mxu0 %v61
    %97 = vmatprep.subr.mxu0 %v64
    %98 = vmatpush1.msra.mxu0 %v63
    %99 = vmatprep.subr.mxu0 %v66
    %100 = vmatpush1.msra.mxu0 %v65
    %101 = vmatprep.subr.mxu0 %v68
    %102 = vmatpush1.msra.mxu0 %v67
    %103 = vmatprep.subr.mxu0 %v70
    %104 = vmatpush1.msra.mxu0 %v69
    %105 = vmatprep.subr.mxu0 %v72
    %106 = vmatpush1.msra.mxu0 %v71
    %107 = vmatprep.subr.mxu0 %v74
    %108 = vmatpush1.msra.mxu0 %v73
    %109 = vmatprep.subr.mxu0 0.0
    %110 = vmatpush1.msra.mxu0 0.0
    %111 = vmatprep.subr.mxu0 0.0
    %112 = vmatpush1.msra.mxu0 0.0
    %113 = vmatprep.subr.mxu0 0.0
    %114 = vmatpush1.msra.mxu0 0.0
    %115 = vmatprep.subr.mxu0 0.0
    %116 = vmatpush1.msra.mxu0 0.0
    %117 = vmatprep.subr.mxu0 0.0
    %118 = vmatpush1.msra.mxu0 0.0
    %119 = vmatprep.subr.mxu0 0.0
    %120 = vmatpush1.msra.mxu0 0.0
    %121 = vmatprep.subr.mxu0 0.0
    %122 = vmatpush1.msra.mxu0 0.0
    %123 = vmatprep.subr.mxu0 0.0
    %124 = vmatpush1.msra.mxu0 0.0
    %125 = vmatprep.subr.mxu0 0.0
    %126 = vmatpush1.msra.mxu0 0.0
    %127 = vmatprep.subr.mxu0 0.0
    %128 = vmatpush1.msra.mxu0 0.0
    %129 = vmatprep.subr.mxu0 0.0
    %130 = vmatpush1.msra.mxu0 0.0
    %131 = vmatprep.subr.mxu0 0.0
    %132 = vmatpush1.msra.mxu0 0.0
    %133 = vmatprep.subr.mxu0 0.0
    %134 = vmatpush1.msra.mxu0 0.0
    %135 = vmatprep.subr.mxu0 0.0
    %136 = vmatpush1.msra.mxu0 0.0
    %137 = vmatprep.subr.mxu0 0.0
    %138 = vmatpush1.msra.mxu0 0.0
    %139 = vmatprep.subr.mxu0 0.0
    %140 = vmatpush1.msra.mxu0 0.0
    %141 = vmatprep.mubr.f32.mxu0 0.0
    %142 = vmatmul.mubr.f32.gmra.mrb[0].mxu0 %v42
    %v143 = vpop.f32.mrb[0].mxu0
    %v144 = vadd.f32 %v76, %v143
    %v145 = vpop.f32.mrb[0].mxu0
    %v146 = vadd.f32 %v76, %v145
    %147 = vdwg.mxu0
    %148 = vst [vmem:[#allocation8] sm:$0xff] %v144
    %149 = vst [vmem:[#allocation8 + $0x8] sm:$0xff] %v146
    // Predicated region
    $region22: #{tpu_custom_call.1} parent=1 // pred_check
      _
    $region23: #{tpu_custom_call.1} parent=1 // pred_check_branch
      %151 = sbr.rel (0) target = $region25
    $region24: #{tpu_custom_call.1} parent=1 // pred_region
      %s153 = ssub.s32 256, 256
      %154 = vsyncadd [#allocation5], %s153
      %s156 = sshll.u32 [#allocation8], 4
      %s157 = int_to_ptr.vmem [resolvable:$true] %s156
      %159 = dma.vmem_to_hbm [thread:$0]  %s157, 256, %s3, [#allocation5]
    $region25: #{tpu_custom_call.1} parent=1 // pred_fallthru
      _
    // Predicated region
    $region26: #{tpu_custom_call.1} parent=1 // pred_check
      _
    $region27: #{tpu_custom_call.1} parent=1 // pred_check_branch
      %161 = sbr.rel (0) target = $region29
    $region28: #{tpu_custom_call.1} parent=1 // pred_region
      %162 = dma.done [#allocation5], 256
    $region29: #{tpu_custom_call.1} parent=1 // pred_fallthru
      _
    %163 = vsyncpa [#allocation4], 1
    %164 = vsyncpa [#allocation7], 1
    %165 = vsyncpa [#allocation5], 1

</llo_original>
